<compile_context>
chip_gen: v7x
topology: tpu7x:2x2x1
jax: 0.10.0
libtpu: 0.0.40
codegen_flags: <defaults>
</compile_context>

<pallas_src>
from typing import NamedTuple

import jax
import jax.numpy as jnp
from jax.experimental import pallas as pl
from jax.experimental.pallas import tpu as pltpu


def _round_up(n, m):
    return ((n + m - 1) // m) * m


def _num_tensorcores_per_chip():
    """2 on v7x (megacore-style dual TC), 1 on v5e/v6e (and unknown chips)."""
    try:
        kind = jax.devices()[0].device_kind.lower()
    except Exception:
        return 1
    return 2 if "7" in kind else 1


class QNNParams(NamedTuple):
    w1: jax.Array   # (n1, n2p)  -- input dim NOT padded, output dim padded to 128
    b1: jax.Array   # (1, n2p)   f32
    w2: jax.Array   # (n2p, n3p)
    b2: jax.Array   # (1, n3p)   f32
    n1: int
    n2: int
    n3: int


def prepare_params(w1, b1, w2, b2, *, dtype=jnp.float32):
    """Pad the static parameters ONCE (hoisted out of the forward hot path).

    w1: (n1, n2) == torch l1.weight.T ; b1: (n2,) ; w2: (n2, n3) ; b2: (n3,).
    Output feature dims are zero-padded to 128 lanes; the tiny input dim n1
    is left un-padded (layer 1 runs as n1 VPU FMAs).  Padding is exact:
    padded hidden columns have zero weight and zero bias, relu(0)=0, and hit
    zero rows of w2; padded output columns are sliced off (or ignored).
    Set dtype=jnp.bfloat16 for production sizes (MXU-native, half the DMA
    bytes); biases stay f32 so all VPU math is f32 (v5e has no bf16 VPU).
    """
    n1, n2 = w1.shape
    n3 = w2.shape[1]
    n2p, n3p = _round_up(n2, 128), _round_up(n3, 128)
    w1p = jnp.zeros((n1, n2p), dtype).at[:, :n2].set(w1.astype(dtype))
    b1p = jnp.zeros((1, n2p), jnp.float32).at[0, :n2].set(b1.astype(jnp.float32))
    w2p = jnp.zeros((n2p, n3p), dtype).at[:n2, :n3].set(w2.astype(dtype))
    b2p = jnp.zeros((1, n3p), jnp.float32).at[0, :n3].set(b2.astype(jnp.float32))
    return QNNParams(w1p, b1p, w2p, b2p, n1, n2, n3)


def _make_qnn_kernel(n1, use_fma):
    def kernel(x_ref, w1_ref, b1_ref, w2_ref, b2_ref, o_ref):
        if use_fma:
            # Layer 1 as n1 broadcast FMAs on the VPU: keeps x and w1
            # un-padded along the tiny K dim (no padded K=128 MXU pass).
            # All elementwise math in f32 (v5e VPU has no bf16 ALUs).
            x = x_ref[...].astype(jnp.float32)
            w1 = w1_ref[...].astype(jnp.float32)
            h = x[:, 0:1] * w1[0:1, :]
            for k in range(1, n1):
                h = h + x[:, k:k + 1] * w1[k:k + 1, :]
        else:
            h = jnp.dot(x_ref[...].astype(w1_ref.dtype), w1_ref[...],
                        preferred_element_type=jnp.float32)
        h = jnp.maximum(h + b1_ref[...], 0.0)
        # Layer 2 on the MXU (n2p x n3p, lane-dense), f32 accumulation.
        y = jnp.dot(h.astype(w2_ref.dtype), w2_ref[...],
                    preferred_element_type=jnp.float32) + b2_ref[...]
        o_ref[...] = y.astype(o_ref.dtype)
    return kernel


# Per-tile activation budget (f32 bytes); keeps even huge batches comfortably
# inside scoped VMEM on v5e/v6e/v7x without tuning vmem_limit_bytes.
_VMEM_ACT_BUDGET = 8 << 20


def qnn_forward(x, params: QNNParams, *, num_tiles=None, keep_padded_output=False):
    """x: (B, n1) -> (B, n3) f32 Q-values (identical to the torch module).

    If keep_padded_output=True, returns the lane-dense (B_padded, n3_padded)
    slab instead (valid data in [:B, :n3]); recommended when the consumer can
    mask, to avoid a narrow 11-lane output and an extra HBM slice copy.
    """
    w1p, b1p, w2p, b2p, n1, _n2, n3 = params
    assert x.shape[1] == n1, f"expected {n1} input features, got {x.shape[1]}"
    B = x.shape[0]
    n2p = w1p.shape[1]
    n3p = w2p.shape[1]
    use_fma = n1 <= 16

    if num_tiles is None:
        num_tiles = _num_tensorcores_per_chip()
    if B < 64:
        # Tiny batch: a single gridless call beats any splitting.
        num_tiles = 1
    # Cap per-tile rows so activations always fit in VMEM for huge batches.
    bytes_per_row = 4 * (n1 + n2p + n3p)
    max_rows = max(8, (_VMEM_ACT_BUDGET // bytes_per_row) // 8 * 8)
    num_tiles = max(num_tiles, pl.cdiv(B, max_rows))

    # Single batch-padding, directly to the final extent (8 sublanes per tile).
    bp = _round_up(B, 8 * num_tiles)
    xp = x if bp == B else jnp.zeros((bp, n1), x.dtype).at[:B].set(x)

    kernel = _make_qnn_kernel(n1, use_fma)
    out_shape = jax.ShapeDtypeStruct((bp, n3p), jnp.float32)

    if num_tiles == 1:
        # Gridless: no pipeline scaffolding, every operand pinned in VMEM.
        vmem = pltpu.MemorySpace.VMEM
        out = pl.pallas_call(
            kernel,
            out_shape=out_shape,
            in_specs=[pl.BlockSpec(memory_space=vmem)] * 5,
            out_specs=pl.BlockSpec(memory_space=vmem),
        )(xp, w1p, b1p, w2p, b2p)
    else:
        # num_tiles batch tiles (2 on v7x => one per TensorCore).  Weights and
        # biases use a constant block index so they stay resident across tiles.
        # TODO(synk): for scaled-up models, consider pipeline_mode=pl.Buffered(1)
        # on the weight BlockSpecs (or bf16 params) to halve weight VMEM on v7x.
        bm = bp // num_tiles
        out = pl.pallas_call(
            kernel,
            out_shape=out_shape,
            grid=(num_tiles,),
            in_specs=[
                pl.BlockSpec((bm, n1), lambda i: (i, 0)),
                pl.BlockSpec((n1, n2p), lambda i: (0, 0)),
                pl.BlockSpec((1, n2p), lambda i: (0, 0)),
                pl.BlockSpec((n2p, n3p), lambda i: (0, 0)),
                pl.BlockSpec((1, n3p), lambda i: (0, 0)),
            ],
            out_specs=pl.BlockSpec((bm, n3p), lambda i: (i, 0)),
            compiler_params=pltpu.CompilerParams(
                dimension_semantics=("parallel",)),
        )(xp, w1p, b1p, w2p, b2p)

    if keep_padded_output:
        return out
    return out[:B, :n3]


def init_params(key, n1, n2, n3):
    """Deterministic init mimicking nn.Linear's uniform(-1/sqrt(fan_in), ...)."""
    k1, k2, k3, k4 = jax.random.split(key, 4)
    bound1 = 1.0 / jnp.sqrt(jnp.float32(n1))
    bound2 = 1.0 / jnp.sqrt(jnp.float32(n2))
    # stored as (in, out) == torch weight.T
    w1 = jax.random.uniform(k1, (n1, n2), jnp.float32, -bound1, bound1)
    b1 = jax.random.uniform(k2, (n2,), jnp.float32, -bound1, bound1)
    w2 = jax.random.uniform(k3, (n2, n3), jnp.float32, -bound2, bound2)
    b2 = jax.random.uniform(k4, (n3,), jnp.float32, -bound2, bound2)
    return w1, b1, w2, b2


def reference_forward(x, w1, b1, w2, b2):
    h = jnp.maximum(x @ w1 + b1, 0.0)
    return h @ w2 + b2


if __name__ == "__main__":
    # Pendulum-like shapes: state dim n1=3, hidden n2=64, n3=11 discretized actions.
    B, n1, n2, n3 = 16, 3, 64, 11

    key = jax.random.PRNGKey(0)
    kx, kp, kx2 = jax.random.split(key, 3)
    x = jax.random.normal(kx, (B, n1), jnp.float32)
    w1, b1, w2, b2 = init_params(kp, n1, n2, n3)

    # Parameter padding done ONCE, outside the forward hot path.
    params_f32 = prepare_params(w1, b1, w2, b2)

    # 1) Small batch -> gridless, fully VMEM-resident path.
    out = jax.block_until_ready(qnn_forward(x, params_f32))
    ref = reference_forward(x, w1, b1, w2, b2)
    assert out.shape == (B, n3)
    assert jnp.allclose(out, ref, atol=1e-5, rtol=1e-5), "mismatch (small batch)"

    # 2) Larger batch -> chip-dependent default (1 tile on v5e/v6e, 2 on v7x).
    Bbig = 512
    xbig = jax.random.normal(kx2, (Bbig, n1), jnp.float32)
    out_big = jax.block_until_ready(qnn_forward(xbig, params_f32))
    ref_big = reference_forward(xbig, w1, b1, w2, b2)
    assert out_big.shape == (Bbig, n3)
    assert jnp.allclose(out_big, ref_big, atol=1e-5, rtol=1e-5), "mismatch (big batch)"

    # 3) Explicit 2-tile parallel grid (exercises the gridded branch on any chip).
    out_2t = jax.block_until_ready(qnn_forward(xbig, params_f32, num_tiles=2))
    assert jnp.allclose(out_2t, ref_big, atol=1e-5, rtol=1e-5), "mismatch (2-tile grid)"

    # 4) Lane-dense padded output (consumer masks instead of slicing).
    out_pad = jax.block_until_ready(
        qnn_forward(xbig, params_f32, keep_padded_output=True))
    assert out_pad.shape[1] % 128 == 0
    assert jnp.allclose(out_pad[:Bbig, :n3], ref_big, atol=1e-5, rtol=1e-5), \
        "mismatch (padded output)"

    # 5) bf16 parameter path (MXU-native inputs, f32 accumulation / VPU math).
    params_bf16 = prepare_params(w1, b1, w2, b2, dtype=jnp.bfloat16)
    out_bf16 = jax.block_until_ready(qnn_forward(xbig, params_bf16))
    assert jnp.allclose(out_bf16, ref_big, atol=5e-2, rtol=5e-2), "mismatch (bf16)"

    print("KERNEL_OK")
</pallas_src>

<mosaic_0001>
module attributes {stable_mosaic.version = 11 : i64} {
  func.func @kernel(%arg0: memref<16x3xf32, #tpu.memory_space<vmem>>, %arg1: memref<3x128xf32, #tpu.memory_space<vmem>>, %arg2: memref<1x128xf32, #tpu.memory_space<vmem>>, %arg3: memref<128x128xf32, #tpu.memory_space<vmem>>, %arg4: memref<1x128xf32, #tpu.memory_space<vmem>>, %arg5: memref<16x128xf32, #tpu.memory_space<vmem>>) attributes {dimension_semantics = [], scalar_prefetch = 0 : i64, scratch_operands = 0 : i64, tpu.core_type = #tpu.core_type<tc>} {
    %c0 = arith.constant 0 : index
    %c0_0 = arith.constant 0 : index
    %0 = vector.load %arg0[%c0, %c0_0] : memref<16x3xf32, #tpu.memory_space<vmem>>, vector<16x3xf32>
    %c0_1 = arith.constant 0 : index
    %c0_2 = arith.constant 0 : index
    %1 = vector.load %arg1[%c0_1, %c0_2] : memref<3x128xf32, #tpu.memory_space<vmem>>, vector<3x128xf32>
    %2 = vector.extract_strided_slice %0 {offsets = [0, 0], sizes = [16, 1], strides = [1, 1]} : vector<16x3xf32> to vector<16x1xf32>
    %3 = vector.extract_strided_slice %1 {offsets = [0, 0], sizes = [1, 128], strides = [1, 1]} : vector<3x128xf32> to vector<1x128xf32>
    %4 = vector.broadcast %2 : vector<16x1xf32> to vector<16x128xf32>
    %5 = vector.broadcast %3 : vector<1x128xf32> to vector<16x128xf32>
    %6 = arith.mulf %4, %5 : vector<16x128xf32>
    %7 = vector.extract_strided_slice %0 {offsets = [0, 1], sizes = [16, 1], strides = [1, 1]} : vector<16x3xf32> to vector<16x1xf32>
    %8 = vector.extract_strided_slice %1 {offsets = [1, 0], sizes = [1, 128], strides = [1, 1]} : vector<3x128xf32> to vector<1x128xf32>
    %9 = vector.broadcast %7 : vector<16x1xf32> to vector<16x128xf32>
    %10 = vector.broadcast %8 : vector<1x128xf32> to vector<16x128xf32>
    %11 = arith.mulf %9, %10 : vector<16x128xf32>
    %12 = arith.addf %6, %11 : vector<16x128xf32>
    %13 = vector.extract_strided_slice %0 {offsets = [0, 2], sizes = [16, 1], strides = [1, 1]} : vector<16x3xf32> to vector<16x1xf32>
    %14 = vector.extract_strided_slice %1 {offsets = [2, 0], sizes = [1, 128], strides = [1, 1]} : vector<3x128xf32> to vector<1x128xf32>
    %15 = vector.broadcast %13 : vector<16x1xf32> to vector<16x128xf32>
    %16 = vector.broadcast %14 : vector<1x128xf32> to vector<16x128xf32>
    %17 = arith.mulf %15, %16 : vector<16x128xf32>
    %18 = arith.addf %12, %17 : vector<16x128xf32>
    %c0_3 = arith.constant 0 : index
    %c0_4 = arith.constant 0 : index
    %19 = vector.load %arg2[%c0_3, %c0_4] : memref<1x128xf32, #tpu.memory_space<vmem>>, vector<1x128xf32>
    %20 = vector.broadcast %19 : vector<1x128xf32> to vector<16x128xf32>
    %21 = arith.addf %18, %20 : vector<16x128xf32>
    %cst = arith.constant 0.000000e+00 : f32
    %22 = vector.broadcast %cst : f32 to vector<16x128xf32>
    %23 = arith.maximumf %21, %22 : vector<16x128xf32>
    %c0_5 = arith.constant 0 : index
    %c0_6 = arith.constant 0 : index
    %24 = vector.load %arg3[%c0_5, %c0_6] : memref<128x128xf32, #tpu.memory_space<vmem>>, vector<128x128xf32>
    %cst_7 = arith.constant dense<0.000000e+00> : vector<16x128xf32>
    %25 = tpu.matmul %23, %24, %cst_7 {dimension_numbers = #tpu.dot_dimension_numbers<[1], [0], [0], [1], [0, 0, 1, 1], [], []>} : vector<16x128xf32>, vector<128x128xf32>, vector<16x128xf32> -> vector<16x128xf32>
    %c0_8 = arith.constant 0 : index
    %c0_9 = arith.constant 0 : index
    %26 = vector.load %arg4[%c0_8, %c0_9] : memref<1x128xf32, #tpu.memory_space<vmem>>, vector<1x128xf32>
    %27 = vector.broadcast %26 : vector<1x128xf32> to vector<16x128xf32>
    %28 = arith.addf %25, %27 : vector<16x128xf32>
    %c0_10 = arith.constant 0 : index
    %c0_11 = arith.constant 0 : index
    %29 = vector.load %arg5[%c0_10, %c0_11] : memref<16x128xf32, #tpu.memory_space<vmem>>, vector<16x128xf32>
    tpu.vector_store %arg5[%c0_10, %c0_11], %28 {strides = array<i32>} : memref<16x128xf32, #tpu.memory_space<vmem>>, vector<16x128xf32>,
    return
  }
}

</mosaic_0001>

<llo_original>
// kernel: tpu_custom_call.1
$region0: #{tpu_custom_call.1}
  #allocation0 [shape = 'u32[]', space=smem, size = 0x4, offset = 0x4, fixed_abs, tag = 'smem constant byte address 0x4 - core index']
  #allocation1 [shape = 'u32[144,128]{1,0:T(1,128)}', space=vmem, size = 0x12000, scoped, tag = 'internal scratch']
  %s0 = inlined_call_operand.vmem [shape: f32[16,3], index: 0, kind: input, shape index: {}]
  %s1 = inlined_call_operand.vmem [shape: f32[3,128], index: 1, kind: input, shape index: {}]
  %s2 = inlined_call_operand.vmem [shape: f32[1,128], index: 2, kind: input, shape index: {}]
  %s3 = inlined_call_operand.hbm [shape: f32[128,128], index: 3, kind: input, shape index: {}]
  %s4 = inlined_call_operand.vmem [shape: f32[1,128], index: 4, kind: input, shape index: {}]
  %s5 = inlined_call_operand.hbm [shape: f32[16,128], index: 5, kind: output, shape index: {}]
  %s6 = sld [smem:[#allocation0]]
  $region34: #{tpu_custom_call.1} parent=0
    _
  %s8 = ssub.s32 1, %s6
  %s9 = scalar_select 0, %s8, %s6
  $region1: #{tpu_custom_call.1} parent=0
    #allocation2 [shape = 'u8[65536]{0}', space=vmem, size = 0x10000, scoped, tag = 'input window, operand 3, single buffered']
    #allocation3 [shape = 's32[1]{0}', space=sflag, size = 0x4, scoped, tag = 'scoped memory for tpu_custom_call.1']
    #allocation4 [shape = 's32[1]{0}', space=sflag, size = 0x4, scoped, tag = 'scoped memory for tpu_custom_call.1']
    #allocation5 [shape = 'u8[8192]{0}', space=vmem, size = 0x2000, scoped, tag = 'output window, operand 0, single buffered']
    %10 = vsyncpa [#allocation3], 0
    %11 = vsyncpa [#allocation4], 0
    // Predicated region
    $region2: #{tpu_custom_call.1} parent=1 // pred_check
      _
    $region3: #{tpu_custom_call.1} parent=1 // pred_check_branch
      %13 = sbr.rel (0) target = $region5
    $region4: #{tpu_custom_call.1} parent=1 // pred_region
      _
    $region5: #{tpu_custom_call.1} parent=1 // pred_fallthru
      _
    // Predicated region
    $region6: #{tpu_custom_call.1} parent=1 // pred_check
      _
    $region7: #{tpu_custom_call.1} parent=1 // pred_check_branch
      %15 = sbr.rel (0) target = $region9
    $region8: #{tpu_custom_call.1} parent=1 // pred_region
      _
    $region9: #{tpu_custom_call.1} parent=1 // pred_fallthru
      _
    // Predicated region
    $region10: #{tpu_custom_call.1} parent=1 // pred_check
      _
    $region11: #{tpu_custom_call.1} parent=1 // pred_check_branch
      %17 = sbr.rel (0) target = $region13
    $region12: #{tpu_custom_call.1} parent=1 // pred_region
      _
    $region13: #{tpu_custom_call.1} parent=1 // pred_fallthru
      _
    // Predicated region
    $region14: #{tpu_custom_call.1} parent=1 // pred_check
      _
    $region15: #{tpu_custom_call.1} parent=1 // pred_check_branch
      %19 = sbr.rel (0) target = $region17
    $region16: #{tpu_custom_call.1} parent=1 // pred_region
      %s21 = ssub.s32 2048, 2048
      %22 = vsyncadd [#allocation3], %s21
      %s23 = sshll.u32 [#allocation2], 4
      %s24 = int_to_ptr.vmem [resolvable:$true] %s23
      %29 = dma.hbm_to_vmem [thread:$0]  %s3, 2048, %s24, [#allocation3], 128, 128, 8
    $region17: #{tpu_custom_call.1} parent=1 // pred_fallthru
      _
    // Predicated region
    $region18: #{tpu_custom_call.1} parent=1 // pred_check
      _
    $region19: #{tpu_custom_call.1} parent=1 // pred_check_branch
      %31 = sbr.rel (0) target = $region21
    $region20: #{tpu_custom_call.1} parent=1 // pred_region
      _
    $region21: #{tpu_custom_call.1} parent=1 // pred_fallthru
      _
    // Predicated region
    $region22: #{tpu_custom_call.1} parent=1 // pred_check
      _
    $region23: #{tpu_custom_call.1} parent=1 // pred_check_branch
      %33 = sbr.rel (0) target = $region25
    $region24: #{tpu_custom_call.1} parent=1 // pred_region
      %34 = dma.done [#allocation3], 2048
    $region25: #{tpu_custom_call.1} parent=1 // pred_fallthru
      _
    %v35 = vld [vmem:[%s0] sm:$0xff]
    %v36 = vld [vmem:[%s0 + $0x8] sm:$0xff]
    %v37 = vld [vmem:[%s1] sm:$0x7]
    %39 = vset.pattern.permute.xlu0 0
    %40 = vperm.xlu0 %39, %v35
    %v41 = vpop.permute.xlu0 %40
    %44 = vset.pattern.permute.xlu0 0
    %45 = vperm.xlu0 %44, %v36
    %v46 = vpop.permute.xlu0 %45
    %v48 = vlaneseq
    %v49 = vshrl.u32 %v48, 7
    %v50 = vsub.s32 0, %v49
    %v51 = vrot.slane %v37, %v50
    %v52 = vmul.f32 %v41, %v51
    %v53 = vmul.f32 %v46, %v51
    %54 = vset.pattern.permute.xlu0 1
    %55 = vperm.xlu0 %54, %v35
    %v56 = vpop.permute.xlu0 %55
    %58 = vset.pattern.permute.xlu0 1
    %59 = vperm.xlu0 %58, %v36
    %v60 = vpop.permute.xlu0 %59
    %v62 = vlaneseq
    %v63 = vshrl.u32 %v62, 7
    %v64 = vsub.s32 1, %v63
    %v65 = vrot.slane %v37, %v64
    %v66 = vmul.f32 %v56, %v65
    %v67 = vmul.f32 %v60, %v65
    %v68 = vadd.f32 %v52, %v66
    %v69 = vadd.f32 %v53, %v67
    %70 = vset.pattern.permute.xlu0 2
    %71 = vperm.xlu0 %70, %v35
    %v72 = vpop.permute.xlu0 %71
    %74 = vset.pattern.permute.xlu0 2
    %75 = vperm.xlu0 %74, %v36
    %v76 = vpop.permute.xlu0 %75
    %v78 = vlaneseq
    %v79 = vshrl.u32 %v78, 7
    %v80 = vsub.s32 2, %v79
    %v81 = vrot.slane %v37, %v80
    %v82 = vmul.f32 %v72, %v81
    %v83 = vmul.f32 %v76, %v81
    %v84 = vadd.f32 %v68, %v82
    %v85 = vadd.f32 %v69, %v83
    %v86 = vld [vmem:[%s2] sm:$0x1]
    %v88 = vlaneseq
    %v89 = vshrl.u32 %v88, 7
    %v90 = vsub.s32 0, %v89
    %v91 = vrot.slane %v86, %v90
    %v93 = vadd.f32 %v84, %v91
    %v94 = vadd.f32 %v85, %v91
    %v95 = vmax.f32 %v93, 0.0
    %v96 = vmax.f32 %v94, 0.0
    %v97 = vld [vmem:[#allocation2] sm:$0xff]
    %v98 = vld [vmem:[#allocation2 + $0x8] sm:$0xff]
    %v99 = vld [vmem:[#allocation2 + $0x10] sm:$0xff]
    %v100 = vld [vmem:[#allocation2 + $0x18] sm:$0xff]
    %v101 = vld [vmem:[#allocation2 + $0x20] sm:$0xff]
    %v102 = vld [vmem:[#allocation2 + $0x28] sm:$0xff]
    %v103 = vld [vmem:[#allocation2 + $0x30] sm:$0xff]
    %v104 = vld [vmem:[#allocation2 + $0x38] sm:$0xff]
    %v105 = vld [vmem:[#allocation2 + $0x40] sm:$0xff]
    %v106 = vld [vmem:[#allocation2 + $0x48] sm:$0xff]
    %v107 = vld [vmem:[#allocation2 + $0x50] sm:$0xff]
    %v108 = vld [vmem:[#allocation2 + $0x58] sm:$0xff]
    %v109 = vld [vmem:[#allocation2 + $0x60] sm:$0xff]
    %v110 = vld [vmem:[#allocation2 + $0x68] sm:$0xff]
    %v111 = vld [vmem:[#allocation2 + $0x70] sm:$0xff]
    %v112 = vld [vmem:[#allocation2 + $0x78] sm:$0xff]
    %v113 = vld [vmem:[%s4] sm:$0x1]
    %v115 = vlaneseq
    %v116 = vshrl.u32 %v115, 7
    %v117 = vsub.s32 0, %v116
    %v118 = vrot.slane %v113, %v117
    %120 = vmatprep.subr.mxu0 0.0
    %121 = vmatpush1.msra.mxu0 %v97
    %122 = vmatprep.subr.mxu0 0.0
    %123 = vmatpush1.msra.mxu0 %v98
    %124 = vmatprep.subr.mxu0 0.0
    %125 = vmatpush1.msra.mxu0 %v99
    %126 = vmatprep.subr.mxu0 0.0
    %127 = vmatpush1.msra.mxu0 %v100
    %128 = vmatprep.subr.mxu0 0.0
    %129 = vmatpush1.msra.mxu0 %v101
    %130 = vmatprep.subr.mxu0 0.0
    %131 = vmatpush1.msra.mxu0 %v102
    %132 = vmatprep.subr.mxu0 0.0
    %133 = vmatpush1.msra.mxu0 %v103
    %134 = vmatprep.subr.mxu0 0.0
    %135 = vmatpush1.msra.mxu0 %v104
    %136 = vmatprep.subr.mxu0 0.0
    %137 = vmatpush1.msra.mxu0 %v105
    %138 = vmatprep.subr.mxu0 0.0
    %139 = vmatpush1.msra.mxu0 %v106
    %140 = vmatprep.subr.mxu0 0.0
    %141 = vmatpush1.msra.mxu0 %v107
    %142 = vmatprep.subr.mxu0 0.0
    %143 = vmatpush1.msra.mxu0 %v108
    %144 = vmatprep.subr.mxu0 0.0
    %145 = vmatpush1.msra.mxu0 %v109
    %146 = vmatprep.subr.mxu0 0.0
    %147 = vmatpush1.msra.mxu0 %v110
    %148 = vmatprep.subr.mxu0 0.0
    %149 = vmatpush1.msra.mxu0 %v111
    %150 = vmatprep.subr.mxu0 0.0
    %151 = vmatpush1.msra.mxu0 %v112
    %152 = vmatprep.subr.mxu0 0.0
    %153 = vmatpush1.msra.mxu0 0.0
    %154 = vmatprep.subr.mxu0 0.0
    %155 = vmatpush1.msra.mxu0 0.0
    %156 = vmatprep.subr.mxu0 0.0
    %157 = vmatpush1.msra.mxu0 0.0
    %158 = vmatprep.subr.mxu0 0.0
    %159 = vmatpush1.msra.mxu0 0.0
    %160 = vmatprep.subr.mxu0 0.0
    %161 = vmatpush1.msra.mxu0 0.0
    %162 = vmatprep.subr.mxu0 0.0
    %163 = vmatpush1.msra.mxu0 0.0
    %164 = vmatprep.subr.mxu0 0.0
    %165 = vmatpush1.msra.mxu0 0.0
    %166 = vmatprep.subr.mxu0 0.0
    %167 = vmatpush1.msra.mxu0 0.0
    %168 = vmatprep.subr.mxu0 0.0
    %169 = vmatpush1.msra.mxu0 0.0
    %170 = vmatprep.subr.mxu0 0.0
    %171 = vmatpush1.msra.mxu0 0.0
    %172 = vmatprep.subr.mxu0 0.0
    %173 = vmatpush1.msra.mxu0 0.0
    %174 = vmatprep.subr.mxu0 0.0
    %175 = vmatpush1.msra.mxu0 0.0
    %176 = vmatprep.subr.mxu0 0.0
    %177 = vmatpush1.msra.mxu0 0.0
    %178 = vmatprep.subr.mxu0 0.0
    %179 = vmatpush1.msra.mxu0 0.0
    %180 = vmatprep.subr.mxu0 0.0
    %181 = vmatpush1.msra.mxu0 0.0
    %182 = vmatprep.subr.mxu0 0.0
    %183 = vmatpush1.msra.mxu0 0.0
    %184 = vmatprep.mubr.f32.mxu0 0.0
    %185 = vmatmul.mubr.f32.gmra.mrb[0].mxu0 %v95
    %v186 = vpop.f32.mrb[0].mxu0
    %v187 = vadd.f32 %v118, %v186
    %v188 = vpop.f32.mrb[0].mxu0
    %189 = vmatprep.mubr.f32.mxu0 0.0
    %190 = vmatmul.mubr.f32.gmra.mrb[0].mxu0 %v96
    %v191 = vpop.f32.mrb[0].mxu0
    %v192 = vadd.f32 %v118, %v191
    %v193 = vpop.f32.mrb[0].mxu0
    %194 = vdwg.mxu0
    %195 = vst [vmem:[#allocation5] sm:$0xff] %v187
    %196 = vst [vmem:[#allocation5 + $0x8] sm:$0xff] %v192
    // Predicated region
    $region26: #{tpu_custom_call.1} parent=1 // pred_check
      _
    $region27: #{tpu_custom_call.1} parent=1 // pred_check_branch
      %198 = sbr.rel (0) target = $region29
    $region28: #{tpu_custom_call.1} parent=1 // pred_region
      %s200 = ssub.s32 256, 256
      %201 = vsyncadd [#allocation4], %s200
      %s202 = sshll.u32 [#allocation5], 4
      %s203 = int_to_ptr.vmem [resolvable:$true] %s202
      %208 = dma.vmem_to_hbm [thread:$0]  %s203, 256, %s5, [#allocation4], 128, 128, 8
    $region29: #{tpu_custom_call.1} parent=1 // pred_fallthru
      _
    // Predicated region
    $region30: #{tpu_custom_call.1} parent=1 // pred_check
      _
    $region31: #{tpu_custom_call.1} parent=1 // pred_check_branch
      %210 = sbr.rel (0) target = $region33
    $region32: #{tpu_custom_call.1} parent=1 // pred_region
      %211 = dma.done [#allocation4], 256
    $region33: #{tpu_custom_call.1} parent=1 // pred_fallthru
      _
    %212 = vsyncpa [#allocation3], 1
    %213 = vsyncpa [#allocation4], 1

</llo_original>
